<compile_context>
chip_gen: v5e
topology: v5e:2x2
jax: 0.10.0
libtpu: 0.0.40
codegen_flags: <defaults>
</compile_context>

<pallas_src>
import functools

import jax
import jax.numpy as jnp
from jax.experimental import pallas as pl
from jax.experimental.pallas import tpu as pltpu


# ----------------------------------------------------------------------------
# Tile selection helpers (C- and dtype-aware, per perf review)
# ----------------------------------------------------------------------------
_TARGET_BLOCK_BYTES = 2 * 1024 * 1024      # ~2 MiB per block -> ~8 MiB pipelined


def _sublane_granule(itemsize):
    return {4: 8, 2: 16, 1: 32}.get(int(itemsize), 8)


def _choose_fwd_tiles(R, T, itemsize):
    """(tR, tT) for the 2-D (B*C, T) forward view.

    Targets ~2 MiB per block; each dim is either the full extent or a multiple
    of the (sublane, 128) granule, so the BlockSpec is always legal and the
    2x-in + 2x-out double-buffered footprint stays well under the scoped-VMEM
    default on v5e (16 MiB), v6e and v7x (32 MiB).
    """
    sub = _sublane_granule(itemsize)
    # Lane tile: full T when small, otherwise a multiple of 128.
    tT = T if T <= 2048 else 2048
    if R <= sub:
        tR = R                                           # full dim -> legal
    else:
        rows = (_TARGET_BLOCK_BYTES // max(1, tT * itemsize)) // sub * sub
        rows = max(sub, rows)
        tR = min(R, rows)                                # full R or mult. of sub
    return int(tR), int(tT)


def _choose_stats_tile_t(C, T, itemsize):
    """Lane tile over T for the one-shot stats pass (block = (1, C, tT))."""
    if T <= 1024:
        return int(T)                                    # full dim -> legal
    lanes = (_TARGET_BLOCK_BYTES // max(1, C * itemsize)) // 128 * 128
    return int(max(128, min(1024, lanes)))               # multiple of 128


# ----------------------------------------------------------------------------
# Kernel 1: data-dependent initialization (ActNorm.initialize)
#   Streams native (B, C, T) once; per-channel sum / sumsq accumulate into
#   (C, 128) per-lane f32 partials; finalize loc = -mean, scale = 1/(std+1e-6)
#   at the last grid step. torch.std defaults to unbiased (ddof=1).
# ----------------------------------------------------------------------------
def _actnorm_stats_kernel(x_ref, loc_ref, scale_ref, sum_ref, sq_ref, *,
                          total_t, tile_t, inv_n, bessel):
    b = pl.program_id(0)
    t = pl.program_id(1)

    @pl.when((b == 0) & (t == 0))
    def _init():
        sum_ref[...] = jnp.zeros_like(sum_ref)
        sq_ref[...] = jnp.zeros_like(sq_ref)

    x = x_ref[0].astype(jnp.float32)                     # (C, tile_t)

    def accumulate(xv):
        # Elementwise adds into (C, 128) lane partials (VALU, free under DMA);
        # tile_t <= 1024 so this unrolls to at most 8 chunks.
        n_full = tile_t // 128
        rem = tile_t % 128
        for j in range(n_full):
            c = xv[:, j * 128:(j + 1) * 128]
            sum_ref[...] += c
            sq_ref[...] += c * c
        if rem:
            c = xv[:, n_full * 128:]
            sum_ref[:, :rem] += c
            sq_ref[:, :rem] += c * c

    if total_t % tile_t != 0:                            # static
        # Mask only the ragged last T tile; interior tiles take the cheap path.
        is_last_t = t == pl.num_programs(1) - 1

        @pl.when(is_last_t)
        def _masked():
            col = jax.lax.broadcasted_iota(jnp.int32, x.shape, 1)
            valid = col < (total_t - t * tile_t)
            accumulate(jnp.where(valid, x, 0.0))

        @pl.when(jnp.logical_not(is_last_t))
        def _unmasked():
            accumulate(x)
    else:
        accumulate(x)

    @pl.when((b == pl.num_programs(0) - 1) & (t == pl.num_programs(1) - 1))
    def _finalize():
        s = jnp.sum(sum_ref[...], axis=1, keepdims=True)     # (C, 1)
        sq = jnp.sum(sq_ref[...], axis=1, keepdims=True)     # (C, 1)
        mean = s * inv_n
        var = (sq * inv_n - mean * mean) * bessel            # unbiased (ddof=1)
        var = jnp.maximum(var, 0.0)
        std = jnp.sqrt(var)
        loc_ref[...] = -mean
        scale_ref[...] = 1.0 / (std + 1e-6)


# ----------------------------------------------------------------------------
# Kernel 2: forward affine on the 2-D (B*C, T) view:  y = x * scale + bias
#   scale/bias are per-row (tR, 1) blocks, resident in VMEM; compute stays in
#   the input dtype. logdet is computed in the wrapper from `scale` alone.
# ----------------------------------------------------------------------------
def _actnorm_forward_kernel(x_ref, scale_ref, bias_ref, y_ref):
    y_ref[...] = (x_ref[...] * scale_ref[...] + bias_ref[...]).astype(y_ref.dtype)


# ----------------------------------------------------------------------------
# Python wrappers
# ----------------------------------------------------------------------------
def actnorm_initialize(x):
    """Compute loc, scale (each (1, C, 1)) from data, like ActNorm.initialize."""
    B, C, T = x.shape
    itemsize = x.dtype.itemsize
    tT = _choose_stats_tile_t(C, T, itemsize)
    grid = (B, pl.cdiv(T, tT))

    n = float(B * T)                                     # exact in Python
    # n == 1 -> unbiased std is NaN (matches torch.std); keep NaN semantics.
    bessel = n / (n - 1.0) if n > 1.0 else float("nan")

    kernel = functools.partial(
        _actnorm_stats_kernel, total_t=T, tile_t=tT, inv_n=1.0 / n, bessel=bessel)

    loc_c1, scale_c1 = pl.pallas_call(
        kernel,
        out_shape=(
            jax.ShapeDtypeStruct((C, 1), jnp.float32),
            jax.ShapeDtypeStruct((C, 1), jnp.float32),
        ),
        grid=grid,
        in_specs=[pl.BlockSpec((1, C, tT), lambda b, t: (b, 0, t))],
        out_specs=(
            pl.BlockSpec((C, 1), lambda b, t: (0, 0)),
            pl.BlockSpec((C, 1), lambda b, t: (0, 0)),
        ),
        scratch_shapes=[
            pltpu.VMEM((C, 128), jnp.float32),           # per-lane sum partials
            pltpu.VMEM((C, 128), jnp.float32),           # per-lane sumsq partials
        ],
        # Sequential accumulation across both axes -> must stay "arbitrary"
        # (a "parallel" axis would let v7x megacore race the shared scratch).
        compiler_params=pltpu.CompilerParams(
            dimension_semantics=("arbitrary", "arbitrary")),
    )(x)
    return loc_c1.reshape(1, C, 1), scale_c1.reshape(1, C, 1)


def actnorm_apply(x, loc, scale):
    """out = scale * (x + loc), logdet = T * sum(log|scale|)."""
    B, C, T = x.shape
    R = B * C
    itemsize = x.dtype.itemsize
    tR, tT = _choose_fwd_tiles(R, T, itemsize)
    grid = (pl.cdiv(R, tR), pl.cdiv(T, tT))

    # Pre-broadcast params to per-row vectors; fold loc into bias = scale*loc
    # (one fused multiply-add per element in the kernel).
    scale_c = scale.reshape(C).astype(jnp.float32)
    loc_c = loc.reshape(C).astype(jnp.float32)
    bias_c = scale_c * loc_c
    scale_rows = jnp.tile(scale_c, B).reshape(R, 1).astype(x.dtype)
    bias_rows = jnp.tile(bias_c, B).reshape(R, 1).astype(x.dtype)

    x2 = x.reshape(R, T)                                 # free row-major collapse

    y2 = pl.pallas_call(
        _actnorm_forward_kernel,
        out_shape=jax.ShapeDtypeStruct((R, T), x.dtype),
        grid=grid,
        in_specs=[
            pl.BlockSpec((tR, tT), lambda r, t: (r, t)),
            pl.BlockSpec((tR, 1), lambda r, t: (r, 0)),
            pl.BlockSpec((tR, 1), lambda r, t: (r, 0)),
        ],
        out_specs=pl.BlockSpec((tR, tT), lambda r, t: (r, t)),
        compiler_params=pltpu.CompilerParams(
            dimension_semantics=("parallel", "parallel")),
    )(x2, scale_rows, bias_rows)

    y = y2.reshape(B, C, T)

    # logdet is O(C) work on the parameters only — keep it in plain JAX so the
    # hot kernel stays a pure streaming elementwise op.
    logdet = T * jnp.sum(jnp.log(jnp.abs(scale_c)))
    return y, logdet


def actnorm_forward(x, loc, scale, initialized, logdet=True):
    """
    Functional equivalent of ActNorm.forward.
    Returns ((out, logdet) or out, new_state=(loc, scale, initialized)).
    """
    # TODO(synk): PyTorch mutates nn.Parameter / the `initialized` buffer
    # in-place; here the updated state is returned functionally instead.
    if not initialized:                      # initialized buffer == 0 -> data init
        loc, scale = actnorm_initialize(x)
        initialized = True
    y, ld = actnorm_apply(x, loc, scale)
    new_state = (loc, scale, initialized)
    if logdet:
        return (y, ld), new_state
    return y, new_state


def actnorm_reverse(y, loc, scale):
    """ActNorm.reverse: output / scale - loc (plain JAX; trivial elementwise)."""
    return y / scale - loc


# ----------------------------------------------------------------------------
# Pure-JAX reference (mirrors the PyTorch code path) for a sanity check
# ----------------------------------------------------------------------------
def _reference(x):
    B, C, T = x.shape
    flatten = jnp.transpose(x, (1, 0, 2)).reshape(C, -1)
    mean = flatten.mean(axis=1).reshape(1, C, 1)
    std = flatten.std(axis=1, ddof=1).reshape(1, C, 1)   # torch.std: unbiased
    loc = -mean
    scale = 1.0 / (std + 1e-6)
    out = scale * (x + loc)
    logdet = T * jnp.sum(jnp.log(jnp.abs(scale)))
    return out, logdet


if __name__ == "__main__":
    key = jax.random.PRNGKey(0)
    B, C, T = 2, 4, 16                      # (batch, in_channel, n_of_group)
    x = jax.random.normal(key, (B, C, T), dtype=jnp.float32) * 2.0 + 0.5

    # Deterministic parameter init, matching nn.Parameter shapes in __init__:
    loc0 = jnp.zeros((1, C, 1), jnp.float32)       # self.loc
    scale0 = jnp.ones((1, C, 1), jnp.float32)      # self.scale
    initialized0 = False                           # self.initialized == 0

    (y, logdet), (loc, scale, initialized) = actnorm_forward(
        x, loc0, scale0, initialized0, logdet=True)
    jax.block_until_ready(y)
    jax.block_until_ready(logdet)

    y_ref, logdet_ref = _reference(x)
    assert jnp.allclose(y, y_ref, atol=1e-5, rtol=1e-5), "output mismatch"
    assert jnp.allclose(logdet, logdet_ref, atol=1e-5, rtol=1e-5), "logdet mismatch"

    # Reverse round-trip sanity check.
    x_rec = actnorm_reverse(y, loc, scale)
    assert jnp.allclose(x_rec, x, atol=1e-4, rtol=1e-4), "reverse mismatch"

    print("KERNEL_OK")
</pallas_src>

<mosaic_0001>
module attributes {stable_mosaic.version = 11 : i64} {
  func.func @_actnorm_stats_kernel(%arg0: i32, %arg1: i32, %arg2: memref<1x4x16xf32, #tpu.memory_space<vmem>>, %arg3: memref<4x1xf32, #tpu.memory_space<vmem>>, %arg4: memref<4x1xf32, #tpu.memory_space<vmem>>, %arg5: memref<4x128xf32, #tpu.memory_space<vmem>>, %arg6: memref<4x128xf32, #tpu.memory_space<vmem>>) attributes {dimension_semantics = [#tpu.dimension_semantics<arbitrary>, #tpu.dimension_semantics<arbitrary>], iteration_bounds = array<i64: 2, 1>, scalar_prefetch = 0 : i64, scratch_operands = 2 : i64, tpu.core_type = #tpu.core_type<tc>, window_params = [{transform_indices = @transform_0, window_bounds = array<i64: 1, 4, 16>}, {pipeline_mode = #tpu.pipeline_mode<synchronous>, transform_indices = @transform_1, window_bounds = array<i64: 4, 1>}, {pipeline_mode = #tpu.pipeline_mode<synchronous>, transform_indices = @transform_2, window_bounds = array<i64: 4, 1>}]} {
    %c0_i32 = arith.constant 0 : i32
    %0 = arith.cmpi eq, %arg0, %c0_i32 : i32
    %c0_i32_0 = arith.constant 0 : i32
    %1 = arith.cmpi eq, %arg1, %c0_i32_0 : i32
    %2 = arith.andi %0, %1 : i1
    %3 = arith.extui %2 : i1 to i32
    %c0_i32_1 = arith.constant 0 : i32
    %4 = arith.cmpi ne, %3, %c0_i32_1 : i32
    scf.if %4 {
      %cst = arith.constant 0.000000e+00 : f32
      %19 = vector.broadcast %cst : f32 to vector<4x128xf32>
      %c0_14 = arith.constant 0 : index
      %c0_15 = arith.constant 0 : index
      %20 = vector.load %arg5[%c0_14, %c0_15] : memref<4x128xf32, #tpu.memory_space<vmem>>, vector<4x128xf32>
      tpu.vector_store %arg5[%c0_14, %c0_15], %19 {strides = array<i32>} : memref<4x128xf32, #tpu.memory_space<vmem>>, vector<4x128xf32>,
      %cst_16 = arith.constant 0.000000e+00 : f32
      %21 = vector.broadcast %cst_16 : f32 to vector<4x128xf32>
      %c0_17 = arith.constant 0 : index
      %c0_18 = arith.constant 0 : index
      %22 = vector.load %arg6[%c0_17, %c0_18] : memref<4x128xf32, #tpu.memory_space<vmem>>, vector<4x128xf32>
      tpu.vector_store %arg6[%c0_17, %c0_18], %21 {strides = array<i32>} : memref<4x128xf32, #tpu.memory_space<vmem>>, vector<4x128xf32>,
    } else {
    }
    %c0 = arith.constant 0 : index
    %c0_2 = arith.constant 0 : index
    %c0_3 = arith.constant 0 : index
    %5 = vector.load %arg2[%c0, %c0_2, %c0_3] : memref<1x4x16xf32, #tpu.memory_space<vmem>>, vector<1x4x16xf32>
    %6 = vector.shape_cast %5 : vector<1x4x16xf32> to vector<4x16xf32>
    %c0_4 = arith.constant 0 : index
    %c0_5 = arith.constant 0 : index
    %7 = vector.load %arg5[%c0_4, %c0_5] : memref<4x128xf32, #tpu.memory_space<vmem>>, vector<4x16xf32>
    %8 = arith.addf %7, %6 : vector<4x16xf32>
    %c0_6 = arith.constant 0 : index
    %c0_7 = arith.constant 0 : index
    %9 = vector.load %arg5[%c0_6, %c0_7] : memref<4x128xf32, #tpu.memory_space<vmem>>, vector<4x16xf32>
    tpu.vector_store %arg5[%c0_6, %c0_7], %8 {strides = array<i32>} : memref<4x128xf32, #tpu.memory_space<vmem>>, vector<4x16xf32>,
    %c0_8 = arith.constant 0 : index
    %c0_9 = arith.constant 0 : index
    %10 = vector.load %arg6[%c0_8, %c0_9] : memref<4x128xf32, #tpu.memory_space<vmem>>, vector<4x16xf32>
    %11 = arith.mulf %6, %6 : vector<4x16xf32>
    %12 = arith.addf %10, %11 : vector<4x16xf32>
    %c0_10 = arith.constant 0 : index
    %c0_11 = arith.constant 0 : index
    %13 = vector.load %arg6[%c0_10, %c0_11] : memref<4x128xf32, #tpu.memory_space<vmem>>, vector<4x16xf32>
    tpu.vector_store %arg6[%c0_10, %c0_11], %12 {strides = array<i32>} : memref<4x128xf32, #tpu.memory_space<vmem>>, vector<4x16xf32>,
    %c1_i32 = arith.constant 1 : i32
    %14 = arith.cmpi eq, %arg0, %c1_i32 : i32
    %c0_i32_12 = arith.constant 0 : i32
    %15 = arith.cmpi eq, %arg1, %c0_i32_12 : i32
    %16 = arith.andi %14, %15 : i1
    %17 = arith.extui %16 : i1 to i32
    %c0_i32_13 = arith.constant 0 : i32
    %18 = arith.cmpi ne, %17, %c0_i32_13 : i32
    scf.if %18 {
      %c0_14 = arith.constant 0 : index
      %c0_15 = arith.constant 0 : index
      %19 = vector.load %arg5[%c0_14, %c0_15] : memref<4x128xf32, #tpu.memory_space<vmem>>, vector<4x128xf32>
      %cst = arith.constant dense<0.000000e+00> : vector<4xf32>
      %20 = vector.multi_reduction <add>, %19, %cst [1] : vector<4x128xf32> to vector<4xf32>
      %21 = vector.shape_cast %20 : vector<4xf32> to vector<4x1xf32>
      %c0_16 = arith.constant 0 : index
      %c0_17 = arith.constant 0 : index
      %22 = vector.load %arg6[%c0_16, %c0_17] : memref<4x128xf32, #tpu.memory_space<vmem>>, vector<4x128xf32>
      %cst_18 = arith.constant dense<0.000000e+00> : vector<4xf32>
      %23 = vector.multi_reduction <add>, %22, %cst_18 [1] : vector<4x128xf32> to vector<4xf32>
      %24 = vector.shape_cast %23 : vector<4xf32> to vector<4x1xf32>
      %cst_19 = arith.constant 3.125000e-02 : f32
      %25 = vector.broadcast %cst_19 : f32 to vector<4x1xf32>
      %26 = arith.mulf %21, %25 : vector<4x1xf32>
      %cst_20 = arith.constant 3.125000e-02 : f32
      %27 = vector.broadcast %cst_20 : f32 to vector<4x1xf32>
      %28 = arith.mulf %24, %27 : vector<4x1xf32>
      %29 = arith.mulf %26, %26 : vector<4x1xf32>
      %30 = arith.subf %28, %29 : vector<4x1xf32>
      %cst_21 = arith.constant 1.03225803 : f32
      %31 = vector.broadcast %cst_21 : f32 to vector<4x1xf32>
      %32 = arith.mulf %30, %31 : vector<4x1xf32>
      %cst_22 = arith.constant 0.000000e+00 : f32
      %33 = vector.broadcast %cst_22 : f32 to vector<4x1xf32>
      %34 = arith.maximumf %32, %33 : vector<4x1xf32>
      %35 = math.sqrt %34 : vector<4x1xf32>
      %cst_23 = arith.constant 0.000000e+00 : f32
      %36 = vector.broadcast %cst_23 : f32 to vector<4x1xf32>
      %37 = arith.subf %36, %26 : vector<4x1xf32>
      %c0_24 = arith.constant 0 : index
      %c0_25 = arith.constant 0 : index
      %38 = vector.load %arg3[%c0_24, %c0_25] : memref<4x1xf32, #tpu.memory_space<vmem>>, vector<4x1xf32>
      tpu.vector_store %arg3[%c0_24, %c0_25], %37 {strides = array<i32>} : memref<4x1xf32, #tpu.memory_space<vmem>>, vector<4x1xf32>,
      %cst_26 = arith.constant 9.99999997E-7 : f32
      %39 = vector.broadcast %cst_26 : f32 to vector<4x1xf32>
      %40 = arith.addf %35, %39 : vector<4x1xf32>
      %cst_27 = arith.constant 1.000000e+00 : f32
      %41 = vector.broadcast %cst_27 : f32 to vector<4x1xf32>
      %42 = arith.divf %41, %40 : vector<4x1xf32>
      %c0_28 = arith.constant 0 : index
      %c0_29 = arith.constant 0 : index
      %43 = vector.load %arg4[%c0_28, %c0_29] : memref<4x1xf32, #tpu.memory_space<vmem>>, vector<4x1xf32>
      tpu.vector_store %arg4[%c0_28, %c0_29], %42 {strides = array<i32>} : memref<4x1xf32, #tpu.memory_space<vmem>>, vector<4x1xf32>,
    } else {
    }
    return
  }
  func.func @transform_0(%arg0: i32, %arg1: i32) -> (i32, i32, i32) {
    %c0_i32 = arith.constant 0 : i32
    %c0_i32_0 = arith.constant 0 : i32
    return %arg0, %c0_i32, %arg1 : i32, i32, i32
  }
  func.func @transform_1(%arg0: i32, %arg1: i32) -> (i32, i32) {
    %c0_i32 = arith.constant 0 : i32
    %c0_i32_0 = arith.constant 0 : i32
    %c0_i32_1 = arith.constant 0 : i32
    return %c0_i32, %c0_i32_0 : i32, i32
  }
  func.func @transform_2(%arg0: i32, %arg1: i32) -> (i32, i32) {
    %c0_i32 = arith.constant 0 : i32
    %c0_i32_0 = arith.constant 0 : i32
    %c0_i32_1 = arith.constant 0 : i32
    return %c0_i32, %c0_i32_0 : i32, i32
  }
}

</mosaic_0001>

<llo_original>
// kernel: tpu_custom_call.1
$region0: #{tpu_custom_call.1}
  #allocation0 [shape = 'u32[]', space=smem, size = 0x4, offset = 0x4, fixed_abs, tag = 'smem constant byte address 0x4 - core index']
  #allocation1 [shape = 'u32[72,128]{1,0:T(1,128)}', space=vmem, size = 0x9000, scoped, tag = 'internal scratch']
  #allocation2 [shape = 'f32[4,128]{1,0:T(4,128)}', space=vmem, size = 0x800, scoped, tag = 'scratch operand']
  #allocation3 [shape = 'f32[4,128]{1,0:T(4,128)}', space=vmem, size = 0x800, scoped, tag = 'scratch operand']
  %s0 = inlined_call_operand.hbm [shape: f32[2,4,16], index: 0, kind: input, shape index: {}]
  %s1 = inlined_call_operand.vmem [shape: f32[4,1], index: 1, kind: output, shape index: {0}]
  %s2 = inlined_call_operand.vmem [shape: f32[4,1], index: 2, kind: output, shape index: {1}]
  %3 = xla_tuple %s1, %s2
  %s4 = sld [smem:[#allocation0]]
  $region57: #{tpu_custom_call.1} parent=0
    _
  %s6 = ssub.s32 1, %s4
  %s7 = scalar_select 0, %s6, %s4
  $region1: #{tpu_custom_call.1} parent=0
    #allocation4 [shape = 'u8[4096]{0}', space=vmem, size = 0x1000, scoped, tag = 'input window, operand 0']
    #allocation5 [shape = 's32[2]{0}', space=sflag, size = 0x8, scoped, tag = 'scoped memory for tpu_custom_call.1']
    %8 = vsyncpa [#allocation5], 0
    %s9 = scalar_lea.sflag [#allocation5], 1
    %10 = vsyncpa %s9, 0
    loop: start=0, step=1, limit=4
    $region2: #{tpu_custom_call.1} parent=1 // loop_pre_header
      _
    $region3: #{tpu_custom_call.1} parent=1 // loop_header
      %s12 = sphi 0, %s16
      %p13 = scmp.ge.s32.totalorder %s12, 4
      %s19 = sphi 0, %s31
      %s20 = sphi 0, %s27
      %s21 = sphi 0, %s19
      %s22 = sphi 0, %s20
      %s23 = sphi 0, %s21
      %s24 = sphi 0, %s22
      %s36 = sphi 0, %s38
      %s39 = sphi 0, %s36
      %s40 = sphi 0, %s39
      %s56 = sphi 0, %s40
      %s60 = sphi 0, %s60
      %s62 = sphi 0, %s60
      %s63 = sphi 0, %s62
      %s77 = sphi 0, %s63
      %s81 = sphi 0, %s81
      %s83 = sphi 0, %s81
      %s84 = sphi 0, %s83
      %s98 = sphi 0, %s84
    $region4: #{tpu_custom_call.1} parent=1 // loop_header_branch
      %15 = sbr.rel (%p13) target = $region8
    $region5: #{tpu_custom_call.1} parent=1 // loop_body
      %s17 = ssub.s32 %s12, 1
      %s18 = ssub.s32 %s12, 2
      %s25 = sadd.s32 1, %s20
      %p26 = scmp.ge.s32.totalorder %s25, 1
      %s27 = scalar_select %p26, 0, %s25
      %s28 = sadd.s32 1, %s19
      %s29 = scalar_select %p26, %s28, %s19
      %p30 = scmp.ge.s32.totalorder %s29, 2
      %s31 = scalar_select %p30, 0, %s29
      %s32 = ssub.s32 %s19, %s31
      %s33 = ssub.s32 %s20, %s27
      %s34 = sor.u32 %s32, %s33
      %p35 = scmp.eq.s32.totalorder %s34, 0
      %s37 = sadd.s32 %s36, 1
      %s38 = scalar_select %p35, %s36, %s37
      %p41 = pneg %p35
      %p42 = scmp.eq.s32.totalorder %s12, 1
      %p43 = por %p41, %p42
      %p44 = scmp.ne.s32.totalorder %s36, %s39
      %p45 = scmp.eq.s32.totalorder %s12, 0
      %p46 = por %p44, %p45
      %p47 = scmp.ne.s32.totalorder %s36, %s39
      %p48 = scmp.eq.s32.totalorder %s17, 1
      %p49 = por %p47, %p48
      %p50 = scmp.ne.s32.totalorder %s39, %s40
      %p51 = scmp.eq.s32.totalorder %s17, 0
      %p52 = por %p50, %p51
      %p53 = scmp.ne.s32.totalorder %s39, %s40
      %p54 = scmp.eq.s32.totalorder %s18, 1
      %p55 = por %p53, %p54
      %p57 = scmp.ne.s32.totalorder %s40, %s56
      %p58 = scmp.eq.s32.totalorder %s18, 0
      %p59 = por %p57, %p58
      %s61 = sadd.s32 %s60, 1
      %p64 = scmp.eq.s32.totalorder %s12, 1
      %p65 = scmp.ne.s32.totalorder %s60, %s62
      %p66 = scmp.eq.s32.totalorder %s12, 0
      %p67 = por %p65, %p66
      %p68 = scmp.ne.s32.totalorder %s60, %s62
      %p69 = scmp.eq.s32.totalorder %s17, 1
      %p70 = por %p68, %p69
      %p71 = scmp.ne.s32.totalorder %s62, %s63
      %p72 = scmp.eq.s32.totalorder %s17, 0
      %p73 = por %p71, %p72
      %p74 = scmp.ne.s32.totalorder %s62, %s63
      %p75 = scmp.eq.s32.totalorder %s18, 1
      %p76 = por %p74, %p75
      %p78 = scmp.ne.s32.totalorder %s63, %s77
      %p79 = scmp.eq.s32.totalorder %s18, 0
      %p80 = por %p78, %p79
      %s82 = sadd.s32 %s81, 1
      %p85 = scmp.eq.s32.totalorder %s12, 1
      %p86 = scmp.ne.s32.totalorder %s81, %s83
      %p87 = scmp.eq.s32.totalorder %s12, 0
      %p88 = por %p86, %p87
      %p89 = scmp.ne.s32.totalorder %s81, %s83
      %p90 = scmp.eq.s32.totalorder %s17, 1
      %p91 = por %p89, %p90
      %p92 = scmp.ne.s32.totalorder %s83, %s84
      %p93 = scmp.eq.s32.totalorder %s17, 0
      %p94 = por %p92, %p93
      %p95 = scmp.ne.s32.totalorder %s83, %s84
      %p96 = scmp.eq.s32.totalorder %s18, 1
      %p97 = por %p95, %p96
      %p99 = scmp.ne.s32.totalorder %s84, %s98
      %p100 = scmp.eq.s32.totalorder %s18, 0
      %p101 = por %p99, %p100
      %p102 = scmp.le.s32.totalorder 1, %s12
      %p103 = scmp.lt.s32.totalorder %s12, 3
      %p104 = pnand %p102, %p103
      %p105 = pneg %p104
      // Predicated region
      $region9: #{tpu_custom_call.1} parent=5 // pred_check
        _
      $region10: #{tpu_custom_call.1} parent=5 // pred_check_branch
        %107 = sbr.rel (%p104) target = $region12
      $region11: #{tpu_custom_call.1} parent=5 // pred_region
        %s108 = ssub.s32 %s12, 1
      $region12: #{tpu_custom_call.1} parent=5 // pred_fallthru
        _
      %p109 = scmp.lt.s32.totalorder %s12, 2
      // Predicated region
      $region13: #{tpu_custom_call.1} parent=5 // pred_check
        %p110 = pneg %p109
      $region14: #{tpu_custom_call.1} parent=5 // pred_check_branch
        %112 = sbr.rel (%p110) target = $region16
      $region15: #{tpu_custom_call.1} parent=5 // pred_region
        // Predicated region
        $region17: #{tpu_custom_call.1} parent=15 // pred_check
          %p113 = pneg %p46
        $region18: #{tpu_custom_call.1} parent=15 // pred_check_branch
          %115 = sbr.rel (%p113) target = $region20
        $region19: #{tpu_custom_call.1} parent=15 // pred_region
          %s116 = sand.u32 %s36, 1
          %s117 = scalar_lea.sflag [#allocation5], %s116
          %s118 = sand.u32 %s36, 1
          %s119 = smul.addr %s118, 4
          %s120 = scalar_lea.vmem [#allocation4], %s119
          %122 = vsyncadd %s117, 0
          %s123 = sadd.s32 %s20, %s19
          %s124 = smul.addr %s123, 4
          %s125 = scalar_lea.hbm %s0, %s124
          %s127 = sshll.u32 %s125, 4
          %s128 = int_to_ptr.hbm [resolvable:$true] %s127
          %s129 = sshll.u32 %s120, 4
          %s130 = int_to_ptr.vmem [resolvable:$true] %s129
          %132 = dma.hbm_to_vmem [thread:$0]  %s128, 64, %s130, %s117
        $region20: #{tpu_custom_call.1} parent=15 // pred_fallthru
          _
      $region16: #{tpu_custom_call.1} parent=5 // pred_fallthru
        _
      %p133 = scmp.le.s32.totalorder 1, %s12
      %p134 = scmp.lt.s32.totalorder %s12, 3
      %p135 = pnand %p133, %p134
      %p136 = pneg %p135
      // Predicated region
      $region21: #{tpu_custom_call.1} parent=5 // pred_check
        _
      $region22: #{tpu_custom_call.1} parent=5 // pred_check_branch
        %138 = sbr.rel (%p135) target = $region24
      $region23: #{tpu_custom_call.1} parent=5 // pred_region
        %s139 = ssub.s32 %s12, 1
        %s140 = sand.u32 %s39, 1
        %s141 = scalar_lea.sflag [#allocation5], %s140
        %s142 = sand.u32 %s39, 1
        %s143 = smul.addr %s142, 4
        %s144 = scalar_lea.vmem [#allocation4], %s143
        // Predicated region
        $region25: #{tpu_custom_call.1} parent=23 // pred_check
          %p145 = pneg %p52
        $region26: #{tpu_custom_call.1} parent=23 // pred_check_branch
          %147 = sbr.rel (%p145) target = $region28
        $region27: #{tpu_custom_call.1} parent=23 // pred_region
          %149 = dma.done %s141, 64
        $region28: #{tpu_custom_call.1} parent=23 // pred_fallthru
          _
        %s150 = sand.u32 %s39, 1
        %s151 = scalar_lea.sflag [#allocation5], %s150
        %s152 = sand.u32 %s39, 1
        %s153 = smul.addr %s152, 4
        %s154 = scalar_lea.vmem [#allocation4], %s153
        %p155 = pneg %p52
        %p156 = pneg %p49
        %p157 = pneg %p73
        %p158 = pneg %p70
        %p159 = pneg %p94
        %p160 = pneg %p91
        %p161 = scmp.eq.s32.totalorder %s21, 0
        %p162 = scmp.eq.s32.totalorder %s22, 0
        %p163 = pnand %p161, %p162
        %p164 = pneg %p163
        // Predicated region
        $region29: #{tpu_custom_call.1} parent=23 // pred_check
          _
        $region30: #{tpu_custom_call.1} parent=23 // pred_check_branch
          %166 = sbr.rel (%p163) target = $region32
        $region31: #{tpu_custom_call.1} parent=23 // pred_region
          %167 = vst [vmem:[#allocation2] sm:$0xf] 0.0
          %168 = vst [vmem:[#allocation3] sm:$0xf] 0.0
        $region32: #{tpu_custom_call.1} parent=23 // pred_fallthru
          _
        %v169 = vld [vmem:[%s144] sm:$0xf]
        %v170 = vld [vmem:[#allocation2] sm:$0xf]
        %v171 = vadd.f32 %v170, %v169
        %vm172 = vcmask 125952
        %173 = vst.msk [vmem:[#allocation2] sm:$0xf] %vm172, %v171
        %v174 = vld [vmem:[#allocation3] sm:$0xf]
        %v175 = vmul.f32 %v169, %v169
        %v176 = vadd.f32 %v174, %v175
        %177 = vst.msk [vmem:[#allocation3] sm:$0xf] %vm172, %v176
        %p178 = scmp.eq.s32.totalorder %s21, 1
        %p179 = pnand %p178, %p162
        %p180 = pneg %p179
        // Predicated region
        $region33: #{tpu_custom_call.1} parent=23 // pred_check
          _
        $region34: #{tpu_custom_call.1} parent=23 // pred_check_branch
          %182 = sbr.rel (%p179) target = $region36
        $region35: #{tpu_custom_call.1} parent=23 // pred_region
          %v183 = vld [vmem:[#allocation2] sm:$0xf]
          %vm184 = vcmask 1043456
          %v185 = vsel %vm184, %v183, 0.0
          %186 = vadd.xlane.f32.xlu0 %v185
          %v187 = vpop.xlane.xlu0 %186
          %v188 = vld [vmem:[#allocation3] sm:$0xf]
          %v189 = vsel %vm184, %v188, 0.0
          %190 = vadd.xlane.f32.xlu0 %v189
          %v191 = vpop.xlane.xlu0 %190
          %v192 = vmul.f32 %v187, 0.03125
          %v193 = vmul.f32 %v191, 0.03125
          %v194 = vmul.f32 %v192, %v192
          %v195 = vsub.f32 %v193, %v194
          %v196 = vmul.f32 %v195, 1.032258
          %v197 = vmax.f32 %v196, 0.0
          %v198 = vrsqrt.pop %v197
          %v199 = vmul.f32 %v198, %v197
          %v200 = vmul.f32 %v199, %v198
          %v201 = vmul.f32 0.5, %v200
          %v202 = vsub.f32 1.5, %v201
          %v203 = vmul.f32 %v198, %v202
          %v204 = vmul.f32 %v197, %v203
          %vm205 = vcmp.eq.f32.partialorder %v197, inf
          %v206 = vsel %vm205, %v197, %v204
          %vm207 = vcmp.eq.f32.partialorder %v197, 0.0
          %v208 = vand.u32 %v197, 2147483648
          %v209 = vsel %vm207, %v208, %v206
          %v210 = vsub.f32 0.0, %v192
          %vm211 = vcmask 3072
          %212 = vst.msk [vmem:[%s1] sm:$0xf] %vm211, %v210
          %v213 = vadd.f32 %v209, 1e-06
          %v214 = vrcp.pop %v213
          %v215 = vmul.f32 %v213, %v214
          %v216 = vsub.f32 1.0, %v215
          %v217 = vmul.f32 %v214, %v216
          %v218 = vadd.f32 %v214, %v217
          %vm219 = vweird.f32 %v213
          %vm220 = vweird.f32 %v214
          %vm221 = vmor %vm219, %vm220
          %v222 = vsel %vm221, %v214, %v218
          %v223 = vand.u32 2147483647, %v213
          %vm224 = vcmp.eq.f32.partialorder %v223, 8.507059e+37
          %v225 = vand.u32 %v213, 2147483648
          %v226 = vor.u32 1.1754944e-38, %v225
          %v227 = vsel %vm224, %v226, %v222
          %v228 = vmul.f32 1.0, %v227
          %229 = vst.msk [vmem:[%s2] sm:$0xf] %vm211, %v228
        $region36: #{tpu_custom_call.1} parent=23 // pred_fallthru
          _
        // Predicated region
        $region37: #{tpu_custom_call.1} parent=23 // pred_check
          %p230 = pneg %p70
        $region38: #{tpu_custom_call.1} parent=23 // pred_check_branch
          %232 = sbr.rel (%p230) target = $region40
        $region39: #{tpu_custom_call.1} parent=23 // pred_region
          _
        $region40: #{tpu_custom_call.1} parent=23 // pred_fallthru
          _
        // Predicated region
        $region41: #{tpu_custom_call.1} parent=23 // pred_check
          %p233 = pneg %p91
        $region42: #{tpu_custom_call.1} parent=23 // pred_check_branch
          %235 = sbr.rel (%p233) target = $region44
        $region43: #{tpu_custom_call.1} parent=23 // pred_region
          _
        $region44: #{tpu_custom_call.1} parent=23 // pred_fallthru
          _
        // Predicated region
        $region45: #{tpu_custom_call.1} parent=23 // pred_check
          %p236 = pneg %p70
        $region46: #{tpu_custom_call.1} parent=23 // pred_check_branch
          %238 = sbr.rel (%p236) target = $region48
        $region47: #{tpu_custom_call.1} parent=23 // pred_region
          _
        $region48: #{tpu_custom_call.1} parent=23 // pred_fallthru
          _
        // Predicated region
        $region49: #{tpu_custom_call.1} parent=23 // pred_check
          %p239 = pneg %p91
        $region50: #{tpu_custom_call.1} parent=23 // pred_check_branch
          %241 = sbr.rel (%p239) target = $region52
        $region51: #{tpu_custom_call.1} parent=23 // pred_region
          _
        $region52: #{tpu_custom_call.1} parent=23 // pred_fallthru
          _
      $region24: #{tpu_custom_call.1} parent=5 // pred_fallthru
        _
      %p242 = scmp.le.s32.totalorder 2, %s12
      // Predicated region
      $region53: #{tpu_custom_call.1} parent=5 // pred_check
        %p243 = pneg %p242
      $region54: #{tpu_custom_call.1} parent=5 // pred_check_branch
        %245 = sbr.rel (%p243) target = $region56
      $region55: #{tpu_custom_call.1} parent=5 // pred_region
        %s246 = ssub.s32 %s12, 2
      $region56: #{tpu_custom_call.1} parent=5 // pred_fallthru
        _
    $region6: #{tpu_custom_call.1} parent=1 // loop_footer
      %s16 = sadd.s32 1, %s12
    $region7: #{tpu_custom_call.1} parent=1 // loop_footer_branch
      %11 = sbr.rel target = $region3
    $region8: #{tpu_custom_call.1} parent=1 // loop_exit
      _
    %247 = vsyncpa [#allocation5], 1
    %s248 = scalar_lea.sflag [#allocation5], 1
    %249 = vsyncpa %s248, 1

</llo_original>
